<compile_context>
chip_gen: v5e
topology: v5e:2x2
jax: 0.10.0
libtpu: 0.0.40
codegen_flags: <defaults>
</compile_context>

<pallas_src>
import functools

import jax
import jax.numpy as jnp
from jax.experimental import pallas as pl
from jax.experimental.pallas import tpu as pltpu

LANE = 128          # lane width
TILE_R_MAX = 2048   # max sublane rows per tile: 2048*128*4B = 1 MiB/input/tile
NUM_CORES = 2       # leading "parallel" grid axis (uses both TCs on v7x)


def _bce_kernel(logits_ref, targets_ref, out_ref, acc_ref, *, inv_count):
    i = pl.program_id(1)

    @pl.when(i == 0)
    def _():
        acc_ref[...] = jnp.zeros_like(acc_ref)

    x = logits_ref[...].astype(jnp.float32)
    t = targets_ref[...].astype(jnp.float32)

    # Fused sigmoid + BCE in logits form (stable "softplus" formulation):
    #   loss = max(x, 0) - x*t + log1p(exp(-|x|))
    # TODO(synk): not bit-identical to torch's BCELoss -100 log clamp for |x| >~ 100.
    loss = jnp.maximum(x, 0.0) - x * t + jnp.log1p(jnp.exp(-jnp.abs(x)))
    acc_ref[...] += loss

    @pl.when(i == pl.num_programs(1) - 1)
    def _():
        # Collapse the (tile_r, 128) accumulator to one (8, 128) block (VPU adds
        # over whole vreg tiles); the tiny final reduce happens in the wrapper.
        partial = acc_ref[...].reshape(-1, 8, LANE).sum(axis=0)
        out_ref[0] = partial * jnp.float32(inv_count)


def bce_loss_2d(logits, targets):
    """Equivalent of BCELoss2d().forward(logits, targets) (mean reduction)."""
    flat_l = logits.reshape(-1)
    flat_t = targets.reshape(-1)
    n = flat_l.shape[0]

    rows_needed = pl.cdiv(n, LANE)
    tile_r = min(TILE_R_MAX, ((rows_needed + 7) // 8) * 8)
    chunk = NUM_CORES * tile_r * LANE
    n_pad = pl.cdiv(n, chunk) * chunk
    pad = n_pad - n
    if pad:
        # Pad logits with a large negative value and targets with 0 so the padded
        # elements contribute ~0 loss -> no separate mask stream needed.
        flat_l = jnp.pad(flat_l, (0, pad), constant_values=-100.0)
        flat_t = jnp.pad(flat_t, (0, pad), constant_values=0.0)

    L = flat_l.reshape(-1, LANE)
    T = flat_t.reshape(-1, LANE)
    tiles_per_core = L.shape[0] // (NUM_CORES * tile_r)

    kernel = functools.partial(_bce_kernel, inv_count=1.0 / float(n))

    partials = pl.pallas_call(
        kernel,
        out_shape=jax.ShapeDtypeStruct((NUM_CORES, 8, LANE), jnp.float32),
        grid_spec=pltpu.PrefetchScalarGridSpec(
            num_scalar_prefetch=0,
            grid=(NUM_CORES, tiles_per_core),
            in_specs=[
                pl.BlockSpec((tile_r, LANE),
                             lambda c, i: (c * tiles_per_core + i, 0)),
                pl.BlockSpec((tile_r, LANE),
                             lambda c, i: (c * tiles_per_core + i, 0)),
            ],
            out_specs=pl.BlockSpec((1, 8, LANE), lambda c, i: (c, 0, 0)),
            scratch_shapes=[pltpu.VMEM((tile_r, LANE), jnp.float32)],
        ),
        compiler_params=pltpu.CompilerParams(
            dimension_semantics=("parallel", "arbitrary"),
        ),
    )(L, T)
    # Each core wrote its partial sums (already scaled by 1/n); finish the reduce.
    return jnp.sum(partials)


if __name__ == "__main__":
    key = jax.random.PRNGKey(0)
    k1, k2 = jax.random.split(key)

    # NCHW inputs, matching a typical segmentation setup.
    logits = jax.random.normal(k1, (2, 4, 16, 16), dtype=jnp.float32)
    targets = (jax.random.uniform(k2, (2, 4, 16, 16)) > 0.5).astype(jnp.float32)

    loss = bce_loss_2d(logits, targets)
    jax.block_until_ready(loss)

    # Reference check in plain JAX (same math as torch BCELoss(mean) on sigmoid).
    p = jax.nn.sigmoid(logits).reshape(-1)
    t = targets.reshape(-1)
    ref = jnp.mean(-(t * jnp.maximum(jnp.log(p), -100.0)
                     + (1.0 - t) * jnp.maximum(jnp.log(1.0 - p), -100.0)))
    assert jnp.allclose(loss, ref, rtol=1e-5, atol=1e-5), (loss, ref)

    print("KERNEL_OK")
</pallas_src>

<mosaic_0001>
module attributes {stable_mosaic.version = 11 : i64} {
  func.func @_bce_kernel(%arg0: i32, %arg1: i32, %arg2: memref<16x128xf32, #tpu.memory_space<vmem>>, %arg3: memref<16x128xf32, #tpu.memory_space<vmem>>, %arg4: memref<1x8x128xf32, #tpu.memory_space<vmem>>, %arg5: memref<16x128xf32, #tpu.memory_space<vmem>>) attributes {dimension_semantics = [#tpu.dimension_semantics<parallel>, #tpu.dimension_semantics<arbitrary>], iteration_bounds = array<i64: 2, 1>, scalar_prefetch = 0 : i64, scratch_operands = 1 : i64, tpu.core_type = #tpu.core_type<tc>, window_params = [{transform_indices = @transform_0, window_bounds = array<i64: 16, 128>}, {transform_indices = @transform_1, window_bounds = array<i64: 16, 128>}, {transform_indices = @transform_2, window_bounds = array<i64: 1, 8, 128>}]} {
    %c0_i32 = arith.constant 0 : i32
    %0 = arith.cmpi eq, %arg1, %c0_i32 : i32
    %1 = arith.extui %0 : i1 to i32
    %c0_i32_0 = arith.constant 0 : i32
    %2 = arith.cmpi ne, %1, %c0_i32_0 : i32
    scf.if %2 {
      %cst_11 = arith.constant 0.000000e+00 : f32
      %21 = vector.broadcast %cst_11 : f32 to vector<16x128xf32>
      %c0_12 = arith.constant 0 : index
      %c0_13 = arith.constant 0 : index
      %22 = vector.load %arg5[%c0_12, %c0_13] : memref<16x128xf32, #tpu.memory_space<vmem>>, vector<16x128xf32>
      tpu.vector_store %arg5[%c0_12, %c0_13], %21 {strides = array<i32>} : memref<16x128xf32, #tpu.memory_space<vmem>>, vector<16x128xf32>,
    } else {
    }
    %c0 = arith.constant 0 : index
    %c0_1 = arith.constant 0 : index
    %3 = vector.load %arg2[%c0, %c0_1] : memref<16x128xf32, #tpu.memory_space<vmem>>, vector<16x128xf32>
    %c0_2 = arith.constant 0 : index
    %c0_3 = arith.constant 0 : index
    %4 = vector.load %arg3[%c0_2, %c0_3] : memref<16x128xf32, #tpu.memory_space<vmem>>, vector<16x128xf32>
    %cst = arith.constant 0.000000e+00 : f32
    %5 = vector.broadcast %cst : f32 to vector<16x128xf32>
    %6 = arith.maximumf %3, %5 : vector<16x128xf32>
    %7 = arith.mulf %3, %4 : vector<16x128xf32>
    %8 = arith.subf %6, %7 : vector<16x128xf32>
    %9 = math.absf %3 : vector<16x128xf32>
    %cst_4 = arith.constant 0.000000e+00 : f32
    %10 = vector.broadcast %cst_4 : f32 to vector<16x128xf32>
    %11 = arith.subf %10, %9 : vector<16x128xf32>
    %12 = math.exp %11 : vector<16x128xf32>
    %13 = math.log1p %12 : vector<16x128xf32>
    %14 = arith.addf %8, %13 : vector<16x128xf32>
    %c0_5 = arith.constant 0 : index
    %c0_6 = arith.constant 0 : index
    %15 = vector.load %arg5[%c0_5, %c0_6] : memref<16x128xf32, #tpu.memory_space<vmem>>, vector<16x128xf32>
    %16 = arith.addf %15, %14 : vector<16x128xf32>
    %c0_7 = arith.constant 0 : index
    %c0_8 = arith.constant 0 : index
    %17 = vector.load %arg5[%c0_7, %c0_8] : memref<16x128xf32, #tpu.memory_space<vmem>>, vector<16x128xf32>
    tpu.vector_store %arg5[%c0_7, %c0_8], %16 {strides = array<i32>} : memref<16x128xf32, #tpu.memory_space<vmem>>, vector<16x128xf32>,
    %c0_i32_9 = arith.constant 0 : i32
    %18 = arith.cmpi eq, %arg1, %c0_i32_9 : i32
    %19 = arith.extui %18 : i1 to i32
    %c0_i32_10 = arith.constant 0 : i32
    %20 = arith.cmpi ne, %19, %c0_i32_10 : i32
    scf.if %20 {
      %c0_11 = arith.constant 0 : index
      %c0_12 = arith.constant 0 : index
      %21 = vector.load %arg5[%c0_11, %c0_12] : memref<16x128xf32, #tpu.memory_space<vmem>>, vector<16x128xf32>
      %22 = vector.shape_cast %21 : vector<16x128xf32> to vector<2x8x128xf32>
      %cst_13 = arith.constant dense<0.000000e+00> : vector<8x128xf32>
      %23 = vector.multi_reduction <add>, %22, %cst_13 [0] : vector<2x8x128xf32> to vector<8x128xf32>
      %cst_14 = arith.constant 4.8828125E-4 : f32
      %24 = vector.broadcast %cst_14 : f32 to vector<8x128xf32>
      %25 = arith.mulf %23, %24 : vector<8x128xf32>
      %c0_15 = arith.constant 0 : index
      %c0_16 = arith.constant 0 : index
      %c0_17 = arith.constant 0 : index
      %26 = vector.load %arg4[%c0_15, %c0_16, %c0_17] : memref<1x8x128xf32, #tpu.memory_space<vmem>>, vector<1x8x128xf32>
      %27 = vector.shape_cast %26 : vector<1x8x128xf32> to vector<8x128xf32>
      %28 = vector.shape_cast %25 : vector<8x128xf32> to vector<1x8x128xf32>
      tpu.vector_store %arg4[%c0_15, %c0_16, %c0_17], %28 {strides = array<i32>} : memref<1x8x128xf32, #tpu.memory_space<vmem>>, vector<1x8x128xf32>,
    } else {
    }
    return
  }
  func.func @transform_0(%arg0: i32, %arg1: i32) -> (i32, i32) {
    %c1_i32 = arith.constant 1 : i32
    %0 = arith.muli %arg0, %c1_i32 : i32
    %1 = arith.addi %0, %arg1 : i32
    %c0_i32 = arith.constant 0 : i32
    %c0_i32_0 = arith.constant 0 : i32
    return %1, %c0_i32 : i32, i32
  }
  func.func @transform_1(%arg0: i32, %arg1: i32) -> (i32, i32) {
    %c1_i32 = arith.constant 1 : i32
    %0 = arith.muli %arg0, %c1_i32 : i32
    %1 = arith.addi %0, %arg1 : i32
    %c0_i32 = arith.constant 0 : i32
    %c0_i32_0 = arith.constant 0 : i32
    return %1, %c0_i32 : i32, i32
  }
  func.func @transform_2(%arg0: i32, %arg1: i32) -> (i32, i32, i32) {
    %c0_i32 = arith.constant 0 : i32
    %c0_i32_0 = arith.constant 0 : i32
    %c0_i32_1 = arith.constant 0 : i32
    return %arg0, %c0_i32, %c0_i32_0 : i32, i32, i32
  }
}

</mosaic_0001>

<llo_original>
// kernel: tpu_custom_call.1
$region0: #{tpu_custom_call.1}
  #allocation0 [shape = 'u32[]', space=smem, size = 0x4, offset = 0x4, fixed_abs, tag = 'smem constant byte address 0x4 - core index']
  #allocation1 [shape = 'u32[72,128]{1,0:T(1,128)}', space=vmem, size = 0x9000, scoped, tag = 'internal scratch']
  #allocation2 [shape = 'f32[16,128]{1,0:T(8,128)}', space=vmem, size = 0x2000, scoped, tag = 'scratch operand']
  %s0 = inlined_call_operand.hbm [shape: f32[32,128], index: 0, kind: input, shape index: {}]
  %s1 = inlined_call_operand.hbm [shape: f32[32,128], index: 1, kind: input, shape index: {}]
  %s2 = inlined_call_operand.hbm [shape: f32[2,8,128], index: 2, kind: output, shape index: {}]
  %s3 = sld [smem:[#allocation0]]
  $region57: #{tpu_custom_call.1} parent=0
    _
  %s5 = ssub.s32 1, %s3
  %s6 = scalar_select 0, %s5, %s3
  $region1: #{tpu_custom_call.1} parent=0
    #allocation3 [shape = 'u8[16384]{0}', space=vmem, size = 0x4000, scoped, tag = 'input window, operand 0']
    #allocation4 [shape = 's32[2]{0}', space=sflag, size = 0x8, scoped, tag = 'scoped memory for tpu_custom_call.1']
    #allocation5 [shape = 's32[2]{0}', space=sflag, size = 0x8, scoped, tag = 'scoped memory for tpu_custom_call.1']
    #allocation6 [shape = 'u8[16384]{0}', space=vmem, size = 0x4000, scoped, tag = 'input window, operand 1']
    #allocation7 [shape = 's32[2]{0}', space=sflag, size = 0x8, scoped, tag = 'scoped memory for tpu_custom_call.1']
    #allocation8 [shape = 'u8[8192]{0}', space=vmem, size = 0x2000, scoped, tag = 'output window, operand 0']
    %7 = vsyncpa [#allocation4], 0
    %s8 = scalar_lea.sflag [#allocation4], 1
    %9 = vsyncpa %s8, 0
    %10 = vsyncpa [#allocation7], 0
    %s11 = scalar_lea.sflag [#allocation7], 1
    %12 = vsyncpa %s11, 0
    %13 = vsyncpa [#allocation5], 0
    %s14 = scalar_lea.sflag [#allocation5], 1
    %15 = vsyncpa %s14, 0
    loop: start=0, step=1, limit=4
    $region2: #{tpu_custom_call.1} parent=1 // loop_pre_header
      _
    $region3: #{tpu_custom_call.1} parent=1 // loop_header
      %s17 = sphi 0, %s21
      %p18 = scmp.ge.s32.totalorder %s17, 4
      %s24 = sphi 0, %s36
      %s25 = sphi 0, %s32
      %s26 = sphi 0, %s24
      %s27 = sphi 0, %s25
      %s28 = sphi 0, %s26
      %s29 = sphi 0, %s27
      %s41 = sphi 0, %s43
      %s44 = sphi 0, %s41
      %s45 = sphi 0, %s44
      %s61 = sphi 0, %s45
      %s69 = sphi 0, %s71
      %s72 = sphi 0, %s69
      %s73 = sphi 0, %s72
      %s89 = sphi 0, %s73
      %s95 = sphi 0, %s97
      %s98 = sphi 0, %s95
      %s99 = sphi 0, %s98
      %s115 = sphi 0, %s99
    $region4: #{tpu_custom_call.1} parent=1 // loop_header_branch
      %20 = sbr.rel (%p18) target = $region8
    $region5: #{tpu_custom_call.1} parent=1 // loop_body
      %s22 = ssub.s32 %s17, 1
      %s23 = ssub.s32 %s17, 2
      %s30 = sadd.s32 1, %s25
      %p31 = scmp.ge.s32.totalorder %s30, 1
      %s32 = scalar_select %p31, 0, %s30
      %s33 = sadd.s32 1, %s24
      %s34 = scalar_select %p31, %s33, %s24
      %p35 = scmp.ge.s32.totalorder %s34, 2
      %s36 = scalar_select %p35, 0, %s34
      %s37 = sadd.s32 %s24, %s25
      %s38 = sadd.s32 %s36, %s32
      %s39 = ssub.s32 %s37, %s38
      %p40 = scmp.eq.s32.totalorder %s39, 0
      %s42 = sadd.s32 %s41, 1
      %s43 = scalar_select %p40, %s41, %s42
      %p46 = pneg %p40
      %p47 = scmp.eq.s32.totalorder %s17, 1
      %p48 = por %p46, %p47
      %p49 = scmp.ne.s32.totalorder %s41, %s44
      %p50 = scmp.eq.s32.totalorder %s17, 0
      %p51 = por %p49, %p50
      %p52 = scmp.ne.s32.totalorder %s41, %s44
      %p53 = scmp.eq.s32.totalorder %s22, 1
      %p54 = por %p52, %p53
      %p55 = scmp.ne.s32.totalorder %s44, %s45
      %p56 = scmp.eq.s32.totalorder %s22, 0
      %p57 = por %p55, %p56
      %p58 = scmp.ne.s32.totalorder %s44, %s45
      %p59 = scmp.eq.s32.totalorder %s23, 1
      %p60 = por %p58, %p59
      %p62 = scmp.ne.s32.totalorder %s45, %s61
      %p63 = scmp.eq.s32.totalorder %s23, 0
      %p64 = por %p62, %p63
      %s65 = sadd.s32 %s24, %s25
      %s66 = sadd.s32 %s36, %s32
      %s67 = ssub.s32 %s65, %s66
      %p68 = scmp.eq.s32.totalorder %s67, 0
      %s70 = sadd.s32 %s69, 1
      %s71 = scalar_select %p68, %s69, %s70
      %p74 = pneg %p68
      %p75 = scmp.eq.s32.totalorder %s17, 1
      %p76 = por %p74, %p75
      %p77 = scmp.ne.s32.totalorder %s69, %s72
      %p78 = scmp.eq.s32.totalorder %s17, 0
      %p79 = por %p77, %p78
      %p80 = scmp.ne.s32.totalorder %s69, %s72
      %p81 = scmp.eq.s32.totalorder %s22, 1
      %p82 = por %p80, %p81
      %p83 = scmp.ne.s32.totalorder %s72, %s73
      %p84 = scmp.eq.s32.totalorder %s22, 0
      %p85 = por %p83, %p84
      %p86 = scmp.ne.s32.totalorder %s72, %s73
      %p87 = scmp.eq.s32.totalorder %s23, 1
      %p88 = por %p86, %p87
      %p90 = scmp.ne.s32.totalorder %s73, %s89
      %p91 = scmp.eq.s32.totalorder %s23, 0
      %p92 = por %p90, %p91
      %s93 = ssub.s32 %s24, %s36
      %p94 = scmp.eq.s32.totalorder %s93, 0
      %s96 = sadd.s32 %s95, 1
      %s97 = scalar_select %p94, %s95, %s96
      %p100 = pneg %p94
      %p101 = scmp.eq.s32.totalorder %s17, 1
      %p102 = por %p100, %p101
      %p103 = scmp.ne.s32.totalorder %s95, %s98
      %p104 = scmp.eq.s32.totalorder %s17, 0
      %p105 = por %p103, %p104
      %p106 = scmp.ne.s32.totalorder %s95, %s98
      %p107 = scmp.eq.s32.totalorder %s22, 1
      %p108 = por %p106, %p107
      %p109 = scmp.ne.s32.totalorder %s98, %s99
      %p110 = scmp.eq.s32.totalorder %s22, 0
      %p111 = por %p109, %p110
      %p112 = scmp.ne.s32.totalorder %s98, %s99
      %p113 = scmp.eq.s32.totalorder %s23, 1
      %p114 = por %p112, %p113
      %p116 = scmp.ne.s32.totalorder %s99, %s115
      %p117 = scmp.eq.s32.totalorder %s23, 0
      %p118 = por %p116, %p117
      %p119 = scmp.le.s32.totalorder 1, %s17
      %p120 = scmp.lt.s32.totalorder %s17, 3
      %p121 = pnand %p119, %p120
      %p122 = pneg %p121
      // Predicated region
      $region9: #{tpu_custom_call.1} parent=5 // pred_check
        _
      $region10: #{tpu_custom_call.1} parent=5 // pred_check_branch
        %124 = sbr.rel (%p121) target = $region12
      $region11: #{tpu_custom_call.1} parent=5 // pred_region
        %s125 = ssub.s32 %s17, 1
      $region12: #{tpu_custom_call.1} parent=5 // pred_fallthru
        _
      %p126 = scmp.lt.s32.totalorder %s17, 2
      // Predicated region
      $region13: #{tpu_custom_call.1} parent=5 // pred_check
        %p127 = pneg %p126
      $region14: #{tpu_custom_call.1} parent=5 // pred_check_branch
        %129 = sbr.rel (%p127) target = $region16
      $region15: #{tpu_custom_call.1} parent=5 // pred_region
        // Predicated region
        $region17: #{tpu_custom_call.1} parent=15 // pred_check
          %p130 = pneg %p51
        $region18: #{tpu_custom_call.1} parent=15 // pred_check_branch
          %132 = sbr.rel (%p130) target = $region20
        $region19: #{tpu_custom_call.1} parent=15 // pred_region
          %s133 = sand.u32 %s41, 1
          %s134 = scalar_lea.sflag [#allocation4], %s133
          %s135 = sand.u32 %s41, 1
          %s136 = smul.addr %s135, 16
          %s137 = scalar_lea.vmem [#allocation3], %s136
          %s138 = sadd.s32 %s24, %s25
          %s139 = smul.u32 2, %s138
          %141 = vsyncadd %s134, 0
          %s142 = smul.addr %s139, 8
          %s143 = scalar_lea.hbm %s0, %s142
          %s144 = sshll.u32 %s143, 4
          %s145 = int_to_ptr.hbm [resolvable:$true] %s144
          %s146 = sshll.u32 %s137, 4
          %s147 = int_to_ptr.vmem [resolvable:$true] %s146
          %152 = dma.hbm_to_vmem [thread:$0]  %s145, 256, %s147, %s134, 128, 128, 8
        $region20: #{tpu_custom_call.1} parent=15 // pred_fallthru
          _
        // Predicated region
        $region21: #{tpu_custom_call.1} parent=15 // pred_check
          %p153 = pneg %p79
        $region22: #{tpu_custom_call.1} parent=15 // pred_check_branch
          %155 = sbr.rel (%p153) target = $region24
        $region23: #{tpu_custom_call.1} parent=15 // pred_region
          %s156 = sand.u32 %s69, 1
          %s157 = scalar_lea.sflag [#allocation7], %s156
          %s158 = sand.u32 %s69, 1
          %s159 = smul.addr %s158, 16
          %s160 = scalar_lea.vmem [#allocation6], %s159
          %s161 = sadd.s32 %s24, %s25
          %s162 = smul.u32 2, %s161
          %164 = vsyncadd %s157, 0
          %s165 = smul.addr %s162, 8
          %s166 = scalar_lea.hbm %s1, %s165
          %s167 = sshll.u32 %s166, 4
          %s168 = int_to_ptr.hbm [resolvable:$true] %s167
          %s169 = sshll.u32 %s160, 4
          %s170 = int_to_ptr.vmem [resolvable:$true] %s169
          %175 = dma.hbm_to_vmem [thread:$0]  %s168, 256, %s170, %s157, 128, 128, 8
        $region24: #{tpu_custom_call.1} parent=15 // pred_fallthru
          _
      $region16: #{tpu_custom_call.1} parent=5 // pred_fallthru
        _
      %p176 = scmp.le.s32.totalorder 1, %s17
      %p177 = scmp.lt.s32.totalorder %s17, 3
      %p178 = pnand %p176, %p177
      %p179 = pneg %p178
      // Predicated region
      $region25: #{tpu_custom_call.1} parent=5 // pred_check
        _
      $region26: #{tpu_custom_call.1} parent=5 // pred_check_branch
        %181 = sbr.rel (%p178) target = $region28
      $region27: #{tpu_custom_call.1} parent=5 // pred_region
        %s182 = ssub.s32 %s17, 1
        %s183 = sand.u32 %s44, 1
        %s184 = scalar_lea.sflag [#allocation4], %s183
        %s185 = sand.u32 %s44, 1
        %s186 = smul.addr %s185, 16
        %s187 = scalar_lea.vmem [#allocation3], %s186
        // Predicated region
        $region29: #{tpu_custom_call.1} parent=27 // pred_check
          %p188 = pneg %p57
        $region30: #{tpu_custom_call.1} parent=27 // pred_check_branch
          %190 = sbr.rel (%p188) target = $region32
        $region31: #{tpu_custom_call.1} parent=27 // pred_region
          %192 = dma.done %s184, 256
        $region32: #{tpu_custom_call.1} parent=27 // pred_fallthru
          _
        %s193 = sand.u32 %s72, 1
        %s194 = scalar_lea.sflag [#allocation7], %s193
        %s195 = sand.u32 %s72, 1
        %s196 = smul.addr %s195, 16
        %s197 = scalar_lea.vmem [#allocation6], %s196
        // Predicated region
        $region33: #{tpu_custom_call.1} parent=27 // pred_check
          %p198 = pneg %p85
        $region34: #{tpu_custom_call.1} parent=27 // pred_check_branch
          %200 = sbr.rel (%p198) target = $region36
        $region35: #{tpu_custom_call.1} parent=27 // pred_region
          %202 = dma.done %s194, 256
        $region36: #{tpu_custom_call.1} parent=27 // pred_fallthru
          _
        %s203 = sand.u32 %s44, 1
        %s204 = scalar_lea.sflag [#allocation4], %s203
        %s205 = sand.u32 %s44, 1
        %s206 = smul.addr %s205, 16
        %s207 = scalar_lea.vmem [#allocation3], %s206
        %p208 = pneg %p57
        %p209 = pneg %p54
        %s210 = sand.u32 %s72, 1
        %s211 = scalar_lea.sflag [#allocation7], %s210
        %s212 = sand.u32 %s72, 1
        %s213 = smul.addr %s212, 16
        %s214 = scalar_lea.vmem [#allocation6], %s213
        %p215 = pneg %p85
        %p216 = pneg %p82
        %p217 = pneg %p111
        %p218 = pneg %p108
        %s219 = sand.u32 %s98, 1
        %s220 = scalar_lea.sflag [#allocation5], %s219
        %s221 = sand.u32 %s98, 1
        %s222 = smul.addr %s221, 8
        %s223 = scalar_lea.vmem [#allocation8], %s222
        %s224 = sadd.s32 %s26, %s27
        %s225 = smul.u32 2, %s224
        %s226 = sadd.s32 %s26, %s27
        %s227 = smul.u32 2, %s226
        %p228 = scmp.eq.s32.totalorder %s27, 0
        // Predicated region
        $region37: #{tpu_custom_call.1} parent=27 // pred_check
          %p229 = pneg %p228
        $region38: #{tpu_custom_call.1} parent=27 // pred_check_branch
          %231 = sbr.rel (%p229) target = $region40
        $region39: #{tpu_custom_call.1} parent=27 // pred_region
          %232 = vst [vmem:[#allocation2] sm:$0xff] 0.0
          %233 = vst [vmem:[#allocation2 + $0x8] sm:$0xff] 0.0
        $region40: #{tpu_custom_call.1} parent=27 // pred_fallthru
          _
        %v234 = vld [vmem:[%s187] sm:$0xff]
        %v235 = vld [vmem:[%s187 + $0x8] sm:$0xff]
        %v236 = vld [vmem:[%s197] sm:$0xff]
        %v237 = vld [vmem:[%s197 + $0x8] sm:$0xff]
        %v238 = vmax.f32 %v234, 0.0
        %v239 = vmax.f32 %v235, 0.0
        %v240 = vmul.f32 %v234, %v236
        %v241 = vmul.f32 %v235, %v237
        %v242 = vsub.f32 %v238, %v240
        %v243 = vsub.f32 %v239, %v241
        %v244 = vand.u32 2147483647, %v234
        %v245 = vand.u32 2147483647, %v235
        %v246 = vsub.f32 0.0, %v244
        %v247 = vsub.f32 0.0, %v245
        %v248 = vmul.f32 %v246, 1.442695
        %v249 = vpow.pop %v248
        %v250 = vmul.f32 %v247, 1.442695
        %v251 = vpow.pop %v250
        %v252 = vadd.f32 %v249, 1.0
        %v253 = vlog2.pop %v252
        %v254 = vmul.f32 %v253, 0.6931472
        %v255 = vmul.f32 -0.5, %v249
        %v256 = vadd.f32 %v255, 1.0
        %v257 = vmul.f32 %v256, %v249
        %v258 = vand.u32 2147483647, %v249
        %vm259 = vcmp.lt.f32.partialorder %v258, 0.0004427343
        %v260 = vsel %vm259, %v257, %v254
        %v261 = vadd.f32 %v251, 1.0
        %v262 = vlog2.pop %v261
        %v263 = vmul.f32 %v262, 0.6931472
        %v264 = vmul.f32 -0.5, %v251
        %v265 = vadd.f32 %v264, 1.0
        %v266 = vmul.f32 %v265, %v251
        %v267 = vand.u32 2147483647, %v251
        %vm268 = vcmp.lt.f32.partialorder %v267, 0.0004427343
        %v269 = vsel %vm268, %v266, %v263
        %v270 = vadd.f32 %v242, %v260
        %v271 = vadd.f32 %v243, %v269
        %v272 = vld [vmem:[#allocation2] sm:$0xff]
        %v273 = vld [vmem:[#allocation2 + $0x8] sm:$0xff]
        %v274 = vadd.f32 %v272, %v270
        %v275 = vadd.f32 %v273, %v271
        %276 = vst [vmem:[#allocation2] sm:$0xff] %v274
        %277 = vst [vmem:[#allocation2 + $0x8] sm:$0xff] %v275
        // Predicated region
        $region41: #{tpu_custom_call.1} parent=27 // pred_check
          %p278 = pneg %p228
        $region42: #{tpu_custom_call.1} parent=27 // pred_check_branch
          %280 = sbr.rel (%p278) target = $region44
        $region43: #{tpu_custom_call.1} parent=27 // pred_region
          %v281 = vld [vmem:[#allocation2] sm:$0xff]
          %v282 = vld [vmem:[#allocation2 + $0x8] sm:$0xff]
          %v283 = vadd.f32 %v281, %v282
          %v284 = vmul.f32 %v283, 0.00048828125
          %285 = vst [vmem:[%s223] sm:$0xff] %v284
        $region44: #{tpu_custom_call.1} parent=27 // pred_fallthru
          _
        %s286 = sand.u32 %s98, 1
        %s287 = scalar_lea.sflag [#allocation5], %s286
        %s288 = sand.u32 %s98, 1
        %s289 = smul.addr %s288, 8
        %s290 = scalar_lea.vmem [#allocation8], %s289
        // Predicated region
        $region45: #{tpu_custom_call.1} parent=27 // pred_check
          %p291 = pneg %p108
        $region46: #{tpu_custom_call.1} parent=27 // pred_check_branch
          %293 = sbr.rel (%p291) target = $region48
        $region47: #{tpu_custom_call.1} parent=27 // pred_region
          %295 = vsyncadd %s287, 0
          %s296 = smul.addr %s26, 8
          %s297 = scalar_lea.hbm %s2, %s296
          %s299 = sshll.u32 %s290, 4
          %s300 = int_to_ptr.vmem [resolvable:$true] %s299
          %s301 = sshll.u32 %s297, 4
          %s302 = int_to_ptr.hbm [resolvable:$true] %s301
          %304 = dma.vmem_to_hbm [thread:$0]  %s300, 128, %s302, %s287
        $region48: #{tpu_custom_call.1} parent=27 // pred_fallthru
          _
      $region28: #{tpu_custom_call.1} parent=5 // pred_fallthru
        _
      %p305 = scmp.le.s32.totalorder 2, %s17
      // Predicated region
      $region49: #{tpu_custom_call.1} parent=5 // pred_check
        %p306 = pneg %p305
      $region50: #{tpu_custom_call.1} parent=5 // pred_check_branch
        %308 = sbr.rel (%p306) target = $region52
      $region51: #{tpu_custom_call.1} parent=5 // pred_region
        %s309 = ssub.s32 %s17, 2
        // Predicated region
        $region53: #{tpu_custom_call.1} parent=51 // pred_check
          %p310 = pneg %p114
        $region54: #{tpu_custom_call.1} parent=51 // pred_check_branch
          %312 = sbr.rel (%p310) target = $region56
        $region55: #{tpu_custom_call.1} parent=51 // pred_region
          %s313 = sand.u32 %s99, 1
          %s314 = scalar_lea.sflag [#allocation5], %s313
          %s315 = sand.u32 %s99, 1
          %s316 = smul.addr %s315, 8
          %s317 = scalar_lea.vmem [#allocation8], %s316
          %319 = dma.done %s314, 128
        $region56: #{tpu_custom_call.1} parent=51 // pred_fallthru
          _
      $region52: #{tpu_custom_call.1} parent=5 // pred_fallthru
        _
    $region6: #{tpu_custom_call.1} parent=1 // loop_footer
      %s21 = sadd.s32 1, %s17
    $region7: #{tpu_custom_call.1} parent=1 // loop_footer_branch
      %16 = sbr.rel target = $region3
    $region8: #{tpu_custom_call.1} parent=1 // loop_exit
      _
    %320 = vsyncpa [#allocation4], 1
    %s321 = scalar_lea.sflag [#allocation4], 1
    %322 = vsyncpa %s321, 1
    %323 = vsyncpa [#allocation7], 1
    %s324 = scalar_lea.sflag [#allocation7], 1
    %325 = vsyncpa %s324, 1
    %326 = vsyncpa [#allocation5], 1
    %s327 = scalar_lea.sflag [#allocation5], 1
    %328 = vsyncpa %s327, 1

</llo_original>
